<compile_context>
chip_gen: v7x
topology: tpu7x:2x2x1
jax: 0.10.0
libtpu: 0.0.40
codegen_flags: <defaults>
</compile_context>

<pallas_src>
import jax
import jax.numpy as jnp
from jax.experimental import pallas as pl
from jax.experimental.pallas import tpu as pltpu


def _largest_divisor_tile(dim: int, preferred: int, multiple: int) -> int:
    """Largest tile <= `preferred` that divides `dim` and is a multiple of
    `multiple`.  Falls back to the full dim (block == full array extent is
    always a legal BlockSpec shape)."""
    if dim <= preferred:
        return dim
    t = (preferred // multiple) * multiple
    while t >= multiple:
        if dim % t == 0:
            return t
        t -= multiple
    return dim


def _bmm_kernel(x_ref, w_ref, o_ref, acc_ref):
    # x_ref: (tb, tm, tk), w_ref: (tb, tk, tn), o_ref: (tb, tm, tn)
    # acc_ref: (tb, tm, tn) f32 accumulator, resident across the K grid axis.
    k = pl.program_id(3)

    @pl.when(k == 0)
    def _init():
        acc_ref[...] = jnp.zeros_like(acc_ref)

    acc_ref[...] += jnp.einsum(
        "bmk,bkn->bmn", x_ref[...], w_ref[...],
        preferred_element_type=jnp.float32)

    @pl.when(k == pl.num_programs(3) - 1)
    def _finalize():
        o_ref[...] = acc_ref[...].astype(o_ref.dtype)


def batch_lora_linear(x: jax.Array, weight: jax.Array, *,
                      compute_dtype=None,
                      tm_pref: int = 256, tn_pref: int = 256,
                      tk_pref: int = 512) -> jax.Array:
    """out[b] = x[b] @ weight[b]  (torch.matmul(x, weight) for 3-D x / weight).

    compute_dtype: optionally cast inputs (e.g. jnp.bfloat16) before the kernel
    to feed the MXU its native dtype; accumulation stays f32 either way.
    """
    B, M, K = x.shape
    Bw, Kw, N = weight.shape
    assert B == Bw and K == Kw, "shape mismatch"
    # TODO(synk): torch.matmul broadcasting (2-D shared weight / broadcast batch
    # dims) is not supported by this wrapper; only strict per-batch 3-D @ 3-D.

    if compute_dtype is not None:
        x = x.astype(compute_dtype)
        weight = weight.astype(compute_dtype)
    out_dtype = jnp.result_type(x.dtype, weight.dtype)

    # Tile sizes: sublane dims multiple of 8, lane dims multiple of 128,
    # or full-extent for small dims.
    tm = _largest_divisor_tile(M, tm_pref, 8)
    tn = _largest_divisor_tile(N, tn_pref, 128)
    tk = _largest_divisor_tile(K, tk_pref, 128)

    # Batch blocking: when one tile already covers the whole per-batch matmul,
    # process several batches per grid step (amortizes per-step overhead for
    # many tiny LoRA matmuls) while keeping VMEM well under the 16 MiB v5e
    # scoped default (double-buffered inputs/outputs + f32 accumulator).
    tb = 1
    if tm == M and tn == N and tk == K:
        in_bytes = max(jnp.dtype(x.dtype).itemsize,
                       jnp.dtype(weight.dtype).itemsize)
        per_batch = ((tm * tk + tk * tn) * in_bytes          # x + w tiles
                     + tm * tn * jnp.dtype(out_dtype).itemsize  # output tile
                     + tm * tn * 4)                          # f32 accumulator
        budget = 4 * 1024 * 1024
        for cand in range(1, B + 1):
            if B % cand == 0 and cand * per_batch <= budget:
                tb = cand

    grid = (B // tb, M // tm, N // tn, K // tk)

    grid_spec = pltpu.PrefetchScalarGridSpec(
        num_scalar_prefetch=0,
        grid=grid,
        in_specs=[
            pl.BlockSpec((tb, tm, tk), lambda b, i, j, k: (b, i, k)),
            pl.BlockSpec((tb, tk, tn), lambda b, i, j, k: (b, k, j)),
        ],
        out_specs=pl.BlockSpec((tb, tm, tn), lambda b, i, j, k: (b, i, j)),
        scratch_shapes=[pltpu.VMEM((tb, tm, tn), jnp.float32)],
    )

    return pl.pallas_call(
        _bmm_kernel,
        out_shape=jax.ShapeDtypeStruct((B, M, N), out_dtype),
        grid_spec=grid_spec,
        compiler_params=pltpu.CompilerParams(
            dimension_semantics=("parallel", "parallel", "parallel",
                                 "arbitrary")),
    )(x, weight)


if __name__ == "__main__":
    key = jax.random.PRNGKey(0)
    kx, kw, kx2, kw2 = jax.random.split(key, 4)

    # Small shapes consistent with the module: batch=2, seq=8, in=32, out=32.
    B, M, K, N = 2, 8, 32, 32
    x = jax.random.normal(kx, (B, M, K), dtype=jnp.float32)
    weight = jax.random.normal(kw, (B, K, N), dtype=jnp.float32) * 0.02

    out = batch_lora_linear(x, weight)
    jax.block_until_ready(out)

    ref = jnp.einsum("bmk,bkn->bmn", x, weight,
                     precision=jax.lax.Precision.HIGHEST)
    assert out.shape == (B, M, N)
    assert jnp.allclose(out, ref, atol=1e-5, rtol=1e-5)

    # Second (still modest) shape that exercises the M/N/K tiling and the
    # K-reduction accumulator path: grid = (2, 1, 1, 2).
    B2, M2, K2, N2 = 2, 128, 1024, 256
    x2 = jax.random.normal(kx2, (B2, M2, K2), dtype=jnp.float32)
    w2 = jax.random.normal(kw2, (B2, K2, N2), dtype=jnp.float32) * 0.02
    out2 = batch_lora_linear(x2, w2)
    jax.block_until_ready(out2)
    ref2 = jnp.einsum("bmk,bkn->bmn", x2, w2,
                      precision=jax.lax.Precision.HIGHEST)
    assert out2.shape == (B2, M2, N2)
    assert jnp.allclose(out2, ref2, atol=1e-2, rtol=2e-2)

    print("KERNEL_OK")
</pallas_src>

<mosaic_0001>
module attributes {stable_mosaic.version = 11 : i64} {
  func.func @_bmm_kernel(%arg0: i32, %arg1: i32, %arg2: i32, %arg3: i32, %arg4: memref<2x8x32xf32, #tpu.memory_space<vmem>>, %arg5: memref<2x32x32xf32, #tpu.memory_space<vmem>>, %arg6: memref<2x8x32xf32, #tpu.memory_space<vmem>>, %arg7: memref<2x8x32xf32, #tpu.memory_space<vmem>>) attributes {dimension_semantics = [#tpu.dimension_semantics<parallel>, #tpu.dimension_semantics<parallel>, #tpu.dimension_semantics<parallel>, #tpu.dimension_semantics<arbitrary>], iteration_bounds = array<i64: 1, 1, 1, 1>, scalar_prefetch = 0 : i64, scratch_operands = 1 : i64, tpu.core_type = #tpu.core_type<tc>, window_params = [{transform_indices = @transform_0, window_bounds = array<i64: 2, 8, 32>}, {transform_indices = @transform_1, window_bounds = array<i64: 2, 32, 32>}, {transform_indices = @transform_2, window_bounds = array<i64: 2, 8, 32>}]} {
    %c0_i32 = arith.constant 0 : i32
    %0 = arith.cmpi eq, %arg3, %c0_i32 : i32
    %1 = arith.extui %0 : i1 to i32
    %c0_i32_0 = arith.constant 0 : i32
    %2 = arith.cmpi ne, %1, %c0_i32_0 : i32
    scf.if %2 {
      %cst_14 = arith.constant 0.000000e+00 : f32
      %12 = vector.broadcast %cst_14 : f32 to vector<2x8x32xf32>
      %c0_15 = arith.constant 0 : index
      %c0_16 = arith.constant 0 : index
      %c0_17 = arith.constant 0 : index
      %13 = vector.load %arg7[%c0_15, %c0_16, %c0_17] : memref<2x8x32xf32, #tpu.memory_space<vmem>>, vector<2x8x32xf32>
      tpu.vector_store %arg7[%c0_15, %c0_16, %c0_17], %12 {strides = array<i32>} : memref<2x8x32xf32, #tpu.memory_space<vmem>>, vector<2x8x32xf32>,
    } else {
    }
    %c0 = arith.constant 0 : index
    %c0_1 = arith.constant 0 : index
    %c0_2 = arith.constant 0 : index
    %3 = vector.load %arg7[%c0, %c0_1, %c0_2] : memref<2x8x32xf32, #tpu.memory_space<vmem>>, vector<2x8x32xf32>
    %c0_3 = arith.constant 0 : index
    %c0_4 = arith.constant 0 : index
    %c0_5 = arith.constant 0 : index
    %4 = vector.load %arg4[%c0_3, %c0_4, %c0_5] : memref<2x8x32xf32, #tpu.memory_space<vmem>>, vector<2x8x32xf32>
    %c0_6 = arith.constant 0 : index
    %c0_7 = arith.constant 0 : index
    %c0_8 = arith.constant 0 : index
    %5 = vector.load %arg5[%c0_6, %c0_7, %c0_8] : memref<2x32x32xf32, #tpu.memory_space<vmem>>, vector<2x32x32xf32>
    "tpu.trace_start"() <{level = 10 : i32, message = "bmk,bkn->bmn"}> : () -> ()
    %cst = arith.constant dense<0.000000e+00> : vector<2x8x32xf32>
    %6 = tpu.matmul %4, %5, %cst {dimension_numbers = #tpu.dot_dimension_numbers<[2], [1], [1], [2], [0, 0, 0, 1, 1, 2], [0], [0]>} : vector<2x8x32xf32>, vector<2x32x32xf32>, vector<2x8x32xf32> -> vector<2x8x32xf32>
    "tpu.trace_stop"() : () -> ()
    %7 = arith.addf %3, %6 : vector<2x8x32xf32>
    %c0_9 = arith.constant 0 : index
    %c0_10 = arith.constant 0 : index
    %c0_11 = arith.constant 0 : index
    %8 = vector.load %arg7[%c0_9, %c0_10, %c0_11] : memref<2x8x32xf32, #tpu.memory_space<vmem>>, vector<2x8x32xf32>
    tpu.vector_store %arg7[%c0_9, %c0_10, %c0_11], %7 {strides = array<i32>} : memref<2x8x32xf32, #tpu.memory_space<vmem>>, vector<2x8x32xf32>,
    %c0_i32_12 = arith.constant 0 : i32
    %9 = arith.cmpi eq, %arg3, %c0_i32_12 : i32
    %10 = arith.extui %9 : i1 to i32
    %c0_i32_13 = arith.constant 0 : i32
    %11 = arith.cmpi ne, %10, %c0_i32_13 : i32
    scf.if %11 {
      %c0_14 = arith.constant 0 : index
      %c0_15 = arith.constant 0 : index
      %c0_16 = arith.constant 0 : index
      %12 = vector.load %arg7[%c0_14, %c0_15, %c0_16] : memref<2x8x32xf32, #tpu.memory_space<vmem>>, vector<2x8x32xf32>
      %c0_17 = arith.constant 0 : index
      %c0_18 = arith.constant 0 : index
      %c0_19 = arith.constant 0 : index
      %13 = vector.load %arg6[%c0_17, %c0_18, %c0_19] : memref<2x8x32xf32, #tpu.memory_space<vmem>>, vector<2x8x32xf32>
      tpu.vector_store %arg6[%c0_17, %c0_18, %c0_19], %12 {strides = array<i32>} : memref<2x8x32xf32, #tpu.memory_space<vmem>>, vector<2x8x32xf32>,
    } else {
    }
    return
  }
  func.func @transform_0(%arg0: i32, %arg1: i32, %arg2: i32, %arg3: i32) -> (i32, i32, i32) {
    %c0_i32 = arith.constant 0 : i32
    return %arg0, %arg1, %arg3 : i32, i32, i32
  }
  func.func @transform_1(%arg0: i32, %arg1: i32, %arg2: i32, %arg3: i32) -> (i32, i32, i32) {
    %c0_i32 = arith.constant 0 : i32
    return %arg0, %arg3, %arg2 : i32, i32, i32
  }
  func.func @transform_2(%arg0: i32, %arg1: i32, %arg2: i32, %arg3: i32) -> (i32, i32, i32) {
    %c0_i32 = arith.constant 0 : i32
    return %arg0, %arg1, %arg2 : i32, i32, i32
  }
}

</mosaic_0001>

<llo_original>
// kernel: tpu_custom_call.1
$region0: #{tpu_custom_call.1}
  #allocation0 [shape = 'u32[]', space=smem, size = 0x4, offset = 0x4, fixed_abs, tag = 'smem constant byte address 0x4 - core index']
  #allocation1 [shape = 'u32[144,128]{1,0:T(1,128)}', space=vmem, size = 0x12000, scoped, tag = 'internal scratch']
  #allocation2 [shape = 'f32[2,8,32]{2,1,0:T(8,128)}', space=vmem, size = 0x2000, scoped, tag = 'scratch operand']
  %s0 = inlined_call_operand.hbm [shape: f32[2,8,32], index: 0, kind: input, shape index: {}]
  %s1 = inlined_call_operand.hbm [shape: f32[2,32,32], index: 1, kind: input, shape index: {}]
  %s2 = inlined_call_operand.hbm [shape: f32[2,8,32], index: 2, kind: output, shape index: {}]
  %s3 = sld [smem:[#allocation0]]
  $region34: #{tpu_custom_call.1} parent=0
    _
  %s5 = ssub.s32 1, %s3
  %s6 = scalar_select 0, %s5, %s3
  $region1: #{tpu_custom_call.1} parent=0
    #allocation3 [shape = 'u8[8192]{0}', space=vmem, size = 0x2000, scoped, tag = 'input window, operand 0, single buffered']
    #allocation4 [shape = 's32[1]{0}', space=sflag, size = 0x4, scoped, tag = 'scoped memory for tpu_custom_call.1']
    #allocation5 [shape = 's32[1]{0}', space=sflag, size = 0x4, scoped, tag = 'scoped memory for tpu_custom_call.1']
    #allocation6 [shape = 'u8[32768]{0}', space=vmem, size = 0x8000, scoped, tag = 'input window, operand 1, single buffered']
    #allocation7 [shape = 's32[1]{0}', space=sflag, size = 0x4, scoped, tag = 'scoped memory for tpu_custom_call.1']
    #allocation8 [shape = 'u8[8192]{0}', space=vmem, size = 0x2000, scoped, tag = 'output window, operand 0, single buffered']
    %7 = vsyncpa [#allocation4], 0
    %8 = vsyncpa [#allocation7], 0
    %9 = vsyncpa [#allocation5], 0
    // Predicated region
    $region2: #{tpu_custom_call.1} parent=1 // pred_check
      _
    $region3: #{tpu_custom_call.1} parent=1 // pred_check_branch
      %11 = sbr.rel (0) target = $region5
    $region4: #{tpu_custom_call.1} parent=1 // pred_region
      %s13 = ssub.s32 256, 256
      %14 = vsyncadd [#allocation4], %s13
      %s15 = sshll.u32 [#allocation3], 4
      %s16 = int_to_ptr.vmem [resolvable:$true] %s15
      %21 = dma.hbm_to_vmem [thread:$0]  %s0, 256, %s16, [#allocation4], 128, 128, 8
    $region5: #{tpu_custom_call.1} parent=1 // pred_fallthru
      _
    // Predicated region
    $region6: #{tpu_custom_call.1} parent=1 // pred_check
      _
    $region7: #{tpu_custom_call.1} parent=1 // pred_check_branch
      %23 = sbr.rel (0) target = $region9
    $region8: #{tpu_custom_call.1} parent=1 // pred_region
      %s25 = ssub.s32 1024, 1024
      %26 = vsyncadd [#allocation7], %s25
      %s27 = sshll.u32 [#allocation6], 4
      %s28 = int_to_ptr.vmem [resolvable:$true] %s27
      %33 = dma.hbm_to_vmem [thread:$0]  %s1, 1024, %s28, [#allocation7], 128, 128, 8
    $region9: #{tpu_custom_call.1} parent=1 // pred_fallthru
      _
    // Predicated region
    $region10: #{tpu_custom_call.1} parent=1 // pred_check
      _
    $region11: #{tpu_custom_call.1} parent=1 // pred_check_branch
      %35 = sbr.rel (0) target = $region13
    $region12: #{tpu_custom_call.1} parent=1 // pred_region
      %36 = dma.done [#allocation4], 256
    $region13: #{tpu_custom_call.1} parent=1 // pred_fallthru
      _
    // Predicated region
    $region14: #{tpu_custom_call.1} parent=1 // pred_check
      _
    $region15: #{tpu_custom_call.1} parent=1 // pred_check_branch
      %38 = sbr.rel (0) target = $region17
    $region16: #{tpu_custom_call.1} parent=1 // pred_region
      %39 = dma.done [#allocation7], 1024
    $region17: #{tpu_custom_call.1} parent=1 // pred_fallthru
      _
    %p40 = scmp.eq.s32.totalorder 0, 0
    // Predicated region
    $region18: #{tpu_custom_call.1} parent=1 // pred_check
      %p41 = pneg %p40
    $region19: #{tpu_custom_call.1} parent=1 // pred_check_branch
      %43 = sbr.rel (%p41) target = $region21
    $region20: #{tpu_custom_call.1} parent=1 // pred_region
      %vm44 = vcmask 261120
      %45 = vst.msk [vmem:[#allocation2] sm:$0xff] %vm44, 0.0
      %46 = vst.msk [vmem:[#allocation2 + $0x8] sm:$0xff] %vm44, 0.0
    $region21: #{tpu_custom_call.1} parent=1 // pred_fallthru
      _
    %v47 = vld [vmem:[#allocation2] sm:$0xff]
    %v48 = vld [vmem:[#allocation2 + $0x8] sm:$0xff]
    %v49 = vld [vmem:[#allocation3] sm:$0xff]
    %v50 = vld [vmem:[#allocation3 + $0x8] sm:$0xff]
    %v51 = vld [vmem:[#allocation6] sm:$0xff]
    %v52 = vld [vmem:[#allocation6 + $0x8] sm:$0xff]
    %v53 = vld [vmem:[#allocation6 + $0x10] sm:$0xff]
    %v54 = vld [vmem:[#allocation6 + $0x18] sm:$0xff]
    %v55 = vld [vmem:[#allocation6 + $0x20] sm:$0xff]
    %v56 = vld [vmem:[#allocation6 + $0x28] sm:$0xff]
    %v57 = vld [vmem:[#allocation6 + $0x30] sm:$0xff]
    %v58 = vld [vmem:[#allocation6 + $0x38] sm:$0xff]
    %vm59 = vcmask 261120
    %v61 = vsel %vm59, %v49, 0
    %63 = vmatprep.subr.mxu0 0.0
    %64 = vmatpush1.msra.mxu0 %v51
    %65 = vmatprep.subr.mxu0 0.0
    %66 = vmatpush1.msra.mxu0 %v52
    %67 = vmatprep.subr.mxu0 0.0
    %68 = vmatpush1.msra.mxu0 %v53
    %69 = vmatprep.subr.mxu0 0.0
    %70 = vmatpush1.msra.mxu0 %v54
    %71 = vmatprep.subr.mxu0 0.0
    %72 = vmatpush1.msra.mxu0 0.0
    %73 = vmatprep.subr.mxu0 0.0
    %74 = vmatpush1.msra.mxu0 0.0
    %75 = vmatprep.subr.mxu0 0.0
    %76 = vmatpush1.msra.mxu0 0.0
    %77 = vmatprep.subr.mxu0 0.0
    %78 = vmatpush1.msra.mxu0 0.0
    %79 = vmatprep.subr.mxu0 0.0
    %80 = vmatpush1.msra.mxu0 0.0
    %81 = vmatprep.subr.mxu0 0.0
    %82 = vmatpush1.msra.mxu0 0.0
    %83 = vmatprep.subr.mxu0 0.0
    %84 = vmatpush1.msra.mxu0 0.0
    %85 = vmatprep.subr.mxu0 0.0
    %86 = vmatpush1.msra.mxu0 0.0
    %87 = vmatprep.subr.mxu0 0.0
    %88 = vmatpush1.msra.mxu0 0.0
    %89 = vmatprep.subr.mxu0 0.0
    %90 = vmatpush1.msra.mxu0 0.0
    %91 = vmatprep.subr.mxu0 0.0
    %92 = vmatpush1.msra.mxu0 0.0
    %93 = vmatprep.subr.mxu0 0.0
    %94 = vmatpush1.msra.mxu0 0.0
    %95 = vmatprep.subr.mxu0 0.0
    %96 = vmatpush1.msra.mxu0 0.0
    %97 = vmatprep.subr.mxu0 0.0
    %98 = vmatpush1.msra.mxu0 0.0
    %99 = vmatprep.subr.mxu0 0.0
    %100 = vmatpush1.msra.mxu0 0.0
    %101 = vmatprep.subr.mxu0 0.0
    %102 = vmatpush1.msra.mxu0 0.0
    %103 = vmatprep.subr.mxu0 0.0
    %104 = vmatpush1.msra.mxu0 0.0
    %105 = vmatprep.subr.mxu0 0.0
    %106 = vmatpush1.msra.mxu0 0.0
    %107 = vmatprep.subr.mxu0 0.0
    %108 = vmatpush1.msra.mxu0 0.0
    %109 = vmatprep.subr.mxu0 0.0
    %110 = vmatpush1.msra.mxu0 0.0
    %111 = vmatprep.subr.mxu0 0.0
    %112 = vmatpush1.msra.mxu0 0.0
    %113 = vmatprep.subr.mxu0 0.0
    %114 = vmatpush1.msra.mxu0 0.0
    %115 = vmatprep.subr.mxu0 0.0
    %116 = vmatpush1.msra.mxu0 0.0
    %117 = vmatprep.subr.mxu0 0.0
    %118 = vmatpush1.msra.mxu0 0.0
    %119 = vmatprep.subr.mxu0 0.0
    %120 = vmatpush1.msra.mxu0 0.0
    %121 = vmatprep.subr.mxu0 0.0
    %122 = vmatpush1.msra.mxu0 0.0
    %123 = vmatprep.subr.mxu0 0.0
    %124 = vmatpush1.msra.mxu0 0.0
    %125 = vmatprep.subr.mxu0 0.0
    %126 = vmatpush1.msra.mxu0 0.0
    %127 = vmatprep.mubr.f32.mxu0 0.0
    %128 = vmatmul.mubr.f32.gmra.mrb[0].mxu0 %v61
    %v129 = vpop.f32.mrb[0].mxu0
    %v130 = vadd.f32 0.0, %v129
    %v131 = vpop.f32.mrb[0].mxu0
    %132 = vdwg.mxu0
    %v134 = vsel %vm59, %v50, 0
    %136 = vmatprep.subr.mxu0 0.0
    %137 = vmatpush1.msra.mxu0 %v55
    %138 = vmatprep.subr.mxu0 0.0
    %139 = vmatpush1.msra.mxu0 %v56
    %140 = vmatprep.subr.mxu0 0.0
    %141 = vmatpush1.msra.mxu0 %v57
    %142 = vmatprep.subr.mxu0 0.0
    %143 = vmatpush1.msra.mxu0 %v58
    %144 = vmatprep.subr.mxu0 0.0
    %145 = vmatpush1.msra.mxu0 0.0
    %146 = vmatprep.subr.mxu0 0.0
    %147 = vmatpush1.msra.mxu0 0.0
    %148 = vmatprep.subr.mxu0 0.0
    %149 = vmatpush1.msra.mxu0 0.0
    %150 = vmatprep.subr.mxu0 0.0
    %151 = vmatpush1.msra.mxu0 0.0
    %152 = vmatprep.subr.mxu0 0.0
    %153 = vmatpush1.msra.mxu0 0.0
    %154 = vmatprep.subr.mxu0 0.0
    %155 = vmatpush1.msra.mxu0 0.0
    %156 = vmatprep.subr.mxu0 0.0
    %157 = vmatpush1.msra.mxu0 0.0
    %158 = vmatprep.subr.mxu0 0.0
    %159 = vmatpush1.msra.mxu0 0.0
    %160 = vmatprep.subr.mxu0 0.0
    %161 = vmatpush1.msra.mxu0 0.0
    %162 = vmatprep.subr.mxu0 0.0
    %163 = vmatpush1.msra.mxu0 0.0
    %164 = vmatprep.subr.mxu0 0.0
    %165 = vmatpush1.msra.mxu0 0.0
    %166 = vmatprep.subr.mxu0 0.0
    %167 = vmatpush1.msra.mxu0 0.0
    %168 = vmatprep.subr.mxu0 0.0
    %169 = vmatpush1.msra.mxu0 0.0
    %170 = vmatprep.subr.mxu0 0.0
    %171 = vmatpush1.msra.mxu0 0.0
    %172 = vmatprep.subr.mxu0 0.0
    %173 = vmatpush1.msra.mxu0 0.0
    %174 = vmatprep.subr.mxu0 0.0
    %175 = vmatpush1.msra.mxu0 0.0
    %176 = vmatprep.subr.mxu0 0.0
    %177 = vmatpush1.msra.mxu0 0.0
    %178 = vmatprep.subr.mxu0 0.0
    %179 = vmatpush1.msra.mxu0 0.0
    %180 = vmatprep.subr.mxu0 0.0
    %181 = vmatpush1.msra.mxu0 0.0
    %182 = vmatprep.subr.mxu0 0.0
    %183 = vmatpush1.msra.mxu0 0.0
    %184 = vmatprep.subr.mxu0 0.0
    %185 = vmatpush1.msra.mxu0 0.0
    %186 = vmatprep.subr.mxu0 0.0
    %187 = vmatpush1.msra.mxu0 0.0
    %188 = vmatprep.subr.mxu0 0.0
    %189 = vmatpush1.msra.mxu0 0.0
    %190 = vmatprep.subr.mxu0 0.0
    %191 = vmatpush1.msra.mxu0 0.0
    %192 = vmatprep.subr.mxu0 0.0
    %193 = vmatpush1.msra.mxu0 0.0
    %194 = vmatprep.subr.mxu0 0.0
    %195 = vmatpush1.msra.mxu0 0.0
    %196 = vmatprep.subr.mxu0 0.0
    %197 = vmatpush1.msra.mxu0 0.0
    %198 = vmatprep.subr.mxu0 0.0
    %199 = vmatpush1.msra.mxu0 0.0
    %200 = vmatprep.mubr.f32.mxu0 0.0
    %201 = vmatmul.mubr.f32.gmra.mrb[0].mxu0 %v134
    %v202 = vpop.f32.mrb[0].mxu0
    %v203 = vadd.f32 0.0, %v202
    %v204 = vpop.f32.mrb[0].mxu0
    %205 = vdwg.mxu0
    %v206 = vadd.f32 %v47, %v130
    %v207 = vadd.f32 %v48, %v203
    %208 = vst.msk [vmem:[#allocation2] sm:$0xff] %vm59, %v206
    %209 = vst.msk [vmem:[#allocation2 + $0x8] sm:$0xff] %vm59, %v207
    // Predicated region
    $region22: #{tpu_custom_call.1} parent=1 // pred_check
      %p210 = pneg %p40
    $region23: #{tpu_custom_call.1} parent=1 // pred_check_branch
      %212 = sbr.rel (%p210) target = $region25
    $region24: #{tpu_custom_call.1} parent=1 // pred_region
      %v213 = vld [vmem:[#allocation2] sm:$0xff]
      %v214 = vld [vmem:[#allocation2 + $0x8] sm:$0xff]
      %215 = vst.msk [vmem:[#allocation8] sm:$0xff] %vm59, %v213
      %216 = vst.msk [vmem:[#allocation8 + $0x8] sm:$0xff] %vm59, %v214
    $region25: #{tpu_custom_call.1} parent=1 // pred_fallthru
      _
    // Predicated region
    $region26: #{tpu_custom_call.1} parent=1 // pred_check
      _
    $region27: #{tpu_custom_call.1} parent=1 // pred_check_branch
      %218 = sbr.rel (0) target = $region29
    $region28: #{tpu_custom_call.1} parent=1 // pred_region
      %s220 = ssub.s32 256, 256
      %221 = vsyncadd [#allocation5], %s220
      %s222 = sshll.u32 [#allocation8], 4
      %s223 = int_to_ptr.vmem [resolvable:$true] %s222
      %228 = dma.vmem_to_hbm [thread:$0]  %s223, 256, %s2, [#allocation5], 128, 128, 8
    $region29: #{tpu_custom_call.1} parent=1 // pred_fallthru
      _
    // Predicated region
    $region30: #{tpu_custom_call.1} parent=1 // pred_check
      _
    $region31: #{tpu_custom_call.1} parent=1 // pred_check_branch
      %230 = sbr.rel (0) target = $region33
    $region32: #{tpu_custom_call.1} parent=1 // pred_region
      %231 = dma.done [#allocation5], 256
    $region33: #{tpu_custom_call.1} parent=1 // pred_fallthru
      _
    %232 = vsyncpa [#allocation4], 1
    %233 = vsyncpa [#allocation7], 1
    %234 = vsyncpa [#allocation5], 1

</llo_original>
